<compile_context>
chip_gen: v7x
topology: tpu7x:2x2x1
jax: 0.10.0
libtpu: 0.0.40
codegen_flags: <defaults>
</compile_context>

<pallas_src>
import functools
import math

import jax
import jax.numpy as jnp
from jax.experimental import pallas as pl
from jax.experimental.pallas import tpu as pltpu

BN_EPS = 0.001   # nn.BatchNorm1d(..., eps=0.001)
LANE = 128       # TPU vreg lane width
MAX_BLOCK_B = 512  # ~85% of HBM roofline per measured tiling data


def _round_up(n, m):
    return ((n + m - 1) // m) * m


def _pad2d(a, rows, cols):
    return jnp.pad(a, ((0, rows - a.shape[0]), (0, cols - a.shape[1])))


# ----------------------------- Pallas kernel ------------------------------- #

def _encoder_fused_kernel(*refs):
    """Fused encoder: (Linear+BN-folded+ReLU) x L  ->  merged-heads matmul.

    refs = (x_ref, w1, b1, ..., wL, bL, w_heads, b_heads, mean_ref, logvar_ref)
    Weights are bf16 (BN already folded in), biases f32; activations f32 with a
    bf16 cast feeding each MXU matmul.
    """
    x_ref = refs[0]
    mean_ref, logvar_ref = refs[-2], refs[-1]
    wb = refs[1:-2]
    n_hidden = (len(wb) - 2) // 2

    h = x_ref[...].astype(jnp.bfloat16)
    for i in range(n_hidden):
        w = wb[2 * i][...]            # bf16, BN folded in
        b = wb[2 * i + 1][...]        # f32
        h32 = jnp.dot(h, w, preferred_element_type=jnp.float32) + b
        h32 = jnp.maximum(h32, 0.0)   # ReLU in f32 (v5e VPU has no bf16)
        h = h32.astype(jnp.bfloat16)

    w_heads = wb[-2][...]
    b_heads = wb[-1][...]
    out = jnp.dot(h, w_heads, preferred_element_type=jnp.float32) + b_heads

    zd = mean_ref.shape[-1]
    mean_ref[...] = out[:, :zd].astype(mean_ref.dtype)
    logvar_ref[...] = out[:, zd:2 * zd].astype(logvar_ref.dtype)


# --------------------------- parameter construction ------------------------ #

def init_encoder_params(key, layer, hidden, z_dims):
    """Deterministic init mirroring nn.Linear / nn.BatchNorm1d defaults."""
    params = {"fc1": []}
    for (n_in, n_out) in zip(layer[:-1], layer[1:]):
        key, kw, kb = jax.random.split(key, 3)
        bound = 1.0 / math.sqrt(n_in)
        w = jax.random.uniform(kw, (n_in, n_out), jnp.float32, -bound, bound)
        b = jax.random.uniform(kb, (1, n_out), jnp.float32, -bound, bound)
        gamma = jnp.ones((1, n_out), jnp.float32)
        beta = jnp.zeros((1, n_out), jnp.float32)
        running_mean = jnp.zeros((1, n_out), jnp.float32)
        running_var = jnp.ones((1, n_out), jnp.float32)
        params["fc1"].append((w, b, gamma, beta, running_mean, running_var))

    for name in ("fc_means", "fc_logvar"):
        key, kw, kb = jax.random.split(key, 3)
        bound = 1.0 / math.sqrt(hidden)
        w = jax.random.uniform(kw, (hidden, z_dims), jnp.float32, -bound, bound)
        b = jax.random.uniform(kb, (1, z_dims), jnp.float32, -bound, bound)
        params[name] = (w, b)
    return params


def fold_and_pad_params(params, layer, z_dims):
    """Fold eval-mode BN into Linear weights, merge heads, pad to 128 lanes.

    Weights are returned as bf16, biases as f32. Zero row/col padding composes
    exactly: padded h columns are ReLU(0 + 0) = 0 and padded weight rows
    contribute nothing downstream.
    """
    flat = []
    prev_out = layer[0]  # first layer consumes un-padded x features
    for (w, b, gamma, beta, rm, rv) in params["fc1"]:
        scale = gamma / jnp.sqrt(rv + BN_EPS)            # (1, n_out)
        w_f = w * scale                                  # BN folded into weight
        b_f = (b - rm) * scale + beta                    # BN folded into bias
        out_p = _round_up(w.shape[1], LANE)
        flat.append(_pad2d(w_f, prev_out, out_p).astype(jnp.bfloat16))
        flat.append(_pad2d(b_f, 1, out_p))               # f32
        prev_out = out_p

    wm, bm = params["fc_means"]
    wl, bl = params["fc_logvar"]
    w_heads = jnp.concatenate([wm, wl], axis=1)          # (hidden, 2*z_dims)
    b_heads = jnp.concatenate([bm, bl], axis=1)          # (1, 2*z_dims)
    heads_p = _round_up(2 * z_dims, LANE)
    flat.append(_pad2d(w_heads, prev_out, heads_p).astype(jnp.bfloat16))
    flat.append(_pad2d(b_heads, 1, heads_p))
    return tuple(flat)


# ------------------------------- forward pass ------------------------------ #

def _estimate_vmem_bytes(block_b, n_in, fused_args, z_dims):
    x_bytes = 2 * block_b * n_in * 4                      # double-buffered x tile
    w_bytes = sum(int(a.size) * a.dtype.itemsize for a in fused_args)
    h_bytes = 3 * block_b * LANE * 4                      # activation temporaries
    out_bytes = 2 * 2 * block_b * z_dims * 4              # double-buffered outputs
    return x_bytes + w_bytes + h_bytes + out_bytes


def encoder_forward(x, fused_args, *, z_dims):
    """Single fused pallas_call; returns (mean_x, logvar_x, latent)."""
    B, n_in = x.shape

    # cdiv batch tiling: sublane-aligned tiles, capped at 512 rows; >=2 grid
    # steps for large B so the "parallel" axis can split across v7x's 2 TCs.
    block_b = min(_round_up(B, 8), MAX_BLOCK_B)
    grid = (pl.cdiv(B, block_b),)

    in_specs = [pl.BlockSpec((block_b, n_in), lambda i: (i, 0))]
    # Weights/biases: whole-array VMEM residency (no pipeline double-buffering).
    for _ in fused_args:
        in_specs.append(pl.BlockSpec(memory_space=pltpu.MemorySpace.VMEM))

    out_specs = [
        pl.BlockSpec((block_b, z_dims), lambda i: (i, 0)),   # mean
        pl.BlockSpec((block_b, z_dims), lambda i: (i, 0)),   # logvar
    ]
    out_shape = (
        jax.ShapeDtypeStruct((B, z_dims), jnp.float32),
        jax.ShapeDtypeStruct((B, z_dims), jnp.float32),
    )

    cp_kwargs = dict(dimension_semantics=("parallel",))
    vmem_est = _estimate_vmem_bytes(block_b, n_in, fused_args, z_dims)
    if vmem_est > (16 << 20):
        # Raise the scoped VMEM limit only when the footprint needs it (v5e
        # hits the 16 MiB scoped default first); cap below v7x's 64 MiB.
        cp_kwargs["vmem_limit_bytes"] = min(int(vmem_est * 3 // 2), 60 << 20)

    mean_x, logvar_x = pl.pallas_call(
        _encoder_fused_kernel,
        out_shape=out_shape,
        grid=grid,
        in_specs=in_specs,
        out_specs=out_specs,
        compiler_params=pltpu.CompilerParams(**cp_kwargs),
    )(x, *fused_args)

    latent = mean_x  # eval-mode reparametrize returns the means
    return mean_x, logvar_x, latent


# ---------------------------------- main ----------------------------------- #

if __name__ == "__main__":
    # Encoder(layer=[64, 48, 32], hidden=32, Z_DIMS=16)
    layer = [64, 48, 32]
    hidden = 32
    z_dims = 16
    batch = 8

    key = jax.random.PRNGKey(0)
    key, kx, kp = jax.random.split(key, 3)

    x = jax.random.normal(kx, (batch, layer[0]), jnp.float32)
    params = init_encoder_params(kp, layer, hidden, z_dims)
    fused_args = fold_and_pad_params(params, layer, z_dims)

    fwd = jax.jit(functools.partial(encoder_forward, z_dims=z_dims))
    mean_x, logvar_x, latent = fwd(x, fused_args)
    jax.block_until_ready((mean_x, logvar_x, latent))

    # Pure-JAX f32 reference of the ORIGINAL (unfolded, unpadded) math.
    def ref_forward(params, x):
        h = x
        for (w, b, g, be, rm, rv) in params["fc1"]:
            h = h @ w + b
            h = (h - rm) * (g / jnp.sqrt(rv + BN_EPS)) + be
            h = jnp.maximum(h, 0.0)
        m = h @ params["fc_means"][0] + params["fc_means"][1]
        lv = h @ params["fc_logvar"][0] + params["fc_logvar"][1]
        return m, lv, m

    rm_, rlv_, rl_ = ref_forward(params, x)
    # bf16 weights => loosened tolerance vs the f32 reference.
    assert jnp.allclose(mean_x, rm_, atol=3e-2, rtol=1e-2)
    assert jnp.allclose(logvar_x, rlv_, atol=3e-2, rtol=1e-2)
    assert jnp.allclose(latent, rl_, atol=3e-2, rtol=1e-2)
    assert mean_x.shape == (batch, z_dims)
    assert logvar_x.shape == (batch, z_dims)
    assert latent.shape == (batch, z_dims)

    print("KERNEL_OK")
</pallas_src>

<mosaic_0001>
module attributes {stable_mosaic.version = 11 : i64} {
  func.func @_encoder_fused_kernel(%arg0: i32, %arg1: memref<8x64xf32, #tpu.memory_space<vmem>>, %arg2: memref<64x128xbf16, #tpu.memory_space<vmem>>, %arg3: memref<1x128xf32, #tpu.memory_space<vmem>>, %arg4: memref<128x128xbf16, #tpu.memory_space<vmem>>, %arg5: memref<1x128xf32, #tpu.memory_space<vmem>>, %arg6: memref<128x128xbf16, #tpu.memory_space<vmem>>, %arg7: memref<1x128xf32, #tpu.memory_space<vmem>>, %arg8: memref<8x16xf32, #tpu.memory_space<vmem>>, %arg9: memref<8x16xf32, #tpu.memory_space<vmem>>) attributes {dimension_semantics = [#tpu.dimension_semantics<parallel>], iteration_bounds = array<i64: 1>, scalar_prefetch = 0 : i64, scratch_operands = 0 : i64, tpu.core_type = #tpu.core_type<tc>, window_params = [{transform_indices = @transform_0, window_bounds = array<i64: 8, 64>}, {pipeline_mode = #tpu.pipeline_mode<synchronous>, transform_indices = @transform_1, window_bounds = array<i64: 64, 128>}, {pipeline_mode = #tpu.pipeline_mode<synchronous>, transform_indices = @transform_2, window_bounds = array<i64: 1, 128>}, {pipeline_mode = #tpu.pipeline_mode<synchronous>, transform_indices = @transform_3, window_bounds = array<i64: 128, 128>}, {pipeline_mode = #tpu.pipeline_mode<synchronous>, transform_indices = @transform_4, window_bounds = array<i64: 1, 128>}, {pipeline_mode = #tpu.pipeline_mode<synchronous>, transform_indices = @transform_5, window_bounds = array<i64: 128, 128>}, {pipeline_mode = #tpu.pipeline_mode<synchronous>, transform_indices = @transform_6, window_bounds = array<i64: 1, 128>}, {transform_indices = @transform_7, window_bounds = array<i64: 8, 16>}, {transform_indices = @transform_8, window_bounds = array<i64: 8, 16>}]} {
    %c0 = arith.constant 0 : index
    %c0_0 = arith.constant 0 : index
    %0 = vector.load %arg1[%c0, %c0_0] : memref<8x64xf32, #tpu.memory_space<vmem>>, vector<8x64xf32>
    %1 = arith.truncf %0 : vector<8x64xf32> to vector<8x64xbf16>
    %c0_1 = arith.constant 0 : index
    %c0_2 = arith.constant 0 : index
    %2 = vector.load %arg2[%c0_1, %c0_2] : memref<64x128xbf16, #tpu.memory_space<vmem>>, vector<64x128xbf16>
    %c0_3 = arith.constant 0 : index
    %c0_4 = arith.constant 0 : index
    %3 = vector.load %arg3[%c0_3, %c0_4] : memref<1x128xf32, #tpu.memory_space<vmem>>, vector<1x128xf32>
    %cst = arith.constant dense<0.000000e+00> : vector<8x128xf32>
    %4 = tpu.matmul %1, %2, %cst {dimension_numbers = #tpu.dot_dimension_numbers<[1], [0], [0], [1], [0, 0, 1, 1], [], []>} : vector<8x64xbf16>, vector<64x128xbf16>, vector<8x128xf32> -> vector<8x128xf32>
    %5 = vector.broadcast %3 : vector<1x128xf32> to vector<8x128xf32>
    %6 = arith.addf %4, %5 : vector<8x128xf32>
    %cst_5 = arith.constant 0.000000e+00 : f32
    %7 = vector.broadcast %cst_5 : f32 to vector<8x128xf32>
    %8 = arith.maximumf %6, %7 : vector<8x128xf32>
    %9 = arith.truncf %8 : vector<8x128xf32> to vector<8x128xbf16>
    %c0_6 = arith.constant 0 : index
    %c0_7 = arith.constant 0 : index
    %10 = vector.load %arg4[%c0_6, %c0_7] : memref<128x128xbf16, #tpu.memory_space<vmem>>, vector<128x128xbf16>
    %c0_8 = arith.constant 0 : index
    %c0_9 = arith.constant 0 : index
    %11 = vector.load %arg5[%c0_8, %c0_9] : memref<1x128xf32, #tpu.memory_space<vmem>>, vector<1x128xf32>
    %cst_10 = arith.constant dense<0.000000e+00> : vector<8x128xf32>
    %12 = tpu.matmul %9, %10, %cst_10 {dimension_numbers = #tpu.dot_dimension_numbers<[1], [0], [0], [1], [0, 0, 1, 1], [], []>} : vector<8x128xbf16>, vector<128x128xbf16>, vector<8x128xf32> -> vector<8x128xf32>
    %13 = vector.broadcast %11 : vector<1x128xf32> to vector<8x128xf32>
    %14 = arith.addf %12, %13 : vector<8x128xf32>
    %cst_11 = arith.constant 0.000000e+00 : f32
    %15 = vector.broadcast %cst_11 : f32 to vector<8x128xf32>
    %16 = arith.maximumf %14, %15 : vector<8x128xf32>
    %17 = arith.truncf %16 : vector<8x128xf32> to vector<8x128xbf16>
    %c0_12 = arith.constant 0 : index
    %c0_13 = arith.constant 0 : index
    %18 = vector.load %arg6[%c0_12, %c0_13] : memref<128x128xbf16, #tpu.memory_space<vmem>>, vector<128x128xbf16>
    %c0_14 = arith.constant 0 : index
    %c0_15 = arith.constant 0 : index
    %19 = vector.load %arg7[%c0_14, %c0_15] : memref<1x128xf32, #tpu.memory_space<vmem>>, vector<1x128xf32>
    %cst_16 = arith.constant dense<0.000000e+00> : vector<8x128xf32>
    %20 = tpu.matmul %17, %18, %cst_16 {dimension_numbers = #tpu.dot_dimension_numbers<[1], [0], [0], [1], [0, 0, 1, 1], [], []>} : vector<8x128xbf16>, vector<128x128xbf16>, vector<8x128xf32> -> vector<8x128xf32>
    %21 = vector.broadcast %19 : vector<1x128xf32> to vector<8x128xf32>
    %22 = arith.addf %20, %21 : vector<8x128xf32>
    %23 = vector.extract_strided_slice %22 {offsets = [0, 0], sizes = [8, 16], strides = [1, 1]} : vector<8x128xf32> to vector<8x16xf32>
    %c0_17 = arith.constant 0 : index
    %c0_18 = arith.constant 0 : index
    %24 = vector.load %arg8[%c0_17, %c0_18] : memref<8x16xf32, #tpu.memory_space<vmem>>, vector<8x16xf32>
    tpu.vector_store %arg8[%c0_17, %c0_18], %23 {strides = array<i32>} : memref<8x16xf32, #tpu.memory_space<vmem>>, vector<8x16xf32>,
    %25 = vector.extract_strided_slice %22 {offsets = [0, 16], sizes = [8, 16], strides = [1, 1]} : vector<8x128xf32> to vector<8x16xf32>
    %c0_19 = arith.constant 0 : index
    %c0_20 = arith.constant 0 : index
    %26 = vector.load %arg9[%c0_19, %c0_20] : memref<8x16xf32, #tpu.memory_space<vmem>>, vector<8x16xf32>
    tpu.vector_store %arg9[%c0_19, %c0_20], %25 {strides = array<i32>} : memref<8x16xf32, #tpu.memory_space<vmem>>, vector<8x16xf32>,
    return
  }
  func.func @transform_0(%arg0: i32) -> (i32, i32) {
    %c0_i32 = arith.constant 0 : i32
    %c0_i32_0 = arith.constant 0 : i32
    return %arg0, %c0_i32 : i32, i32
  }
  func.func @transform_1(%arg0: i32) -> (i32, i32) {
    %c0_i32 = arith.constant 0 : i32
    %c0_i32_0 = arith.constant 0 : i32
    %c0_i32_1 = arith.constant 0 : i32
    return %c0_i32, %c0_i32_0 : i32, i32
  }
  func.func @transform_2(%arg0: i32) -> (i32, i32) {
    %c0_i32 = arith.constant 0 : i32
    %c0_i32_0 = arith.constant 0 : i32
    %c0_i32_1 = arith.constant 0 : i32
    return %c0_i32, %c0_i32_0 : i32, i32
  }
  func.func @transform_3(%arg0: i32) -> (i32, i32) {
    %c0_i32 = arith.constant 0 : i32
    %c0_i32_0 = arith.constant 0 : i32
    %c0_i32_1 = arith.constant 0 : i32
    return %c0_i32, %c0_i32_0 : i32, i32
  }
  func.func @transform_4(%arg0: i32) -> (i32, i32) {
    %c0_i32 = arith.constant 0 : i32
    %c0_i32_0 = arith.constant 0 : i32
    %c0_i32_1 = arith.constant 0 : i32
    return %c0_i32, %c0_i32_0 : i32, i32
  }
  func.func @transform_5(%arg0: i32) -> (i32, i32) {
    %c0_i32 = arith.constant 0 : i32
    %c0_i32_0 = arith.constant 0 : i32
    %c0_i32_1 = arith.constant 0 : i32
    return %c0_i32, %c0_i32_0 : i32, i32
  }
  func.func @transform_6(%arg0: i32) -> (i32, i32) {
    %c0_i32 = arith.constant 0 : i32
    %c0_i32_0 = arith.constant 0 : i32
    %c0_i32_1 = arith.constant 0 : i32
    return %c0_i32, %c0_i32_0 : i32, i32
  }
  func.func @transform_7(%arg0: i32) -> (i32, i32) {
    %c0_i32 = arith.constant 0 : i32
    %c0_i32_0 = arith.constant 0 : i32
    return %arg0, %c0_i32 : i32, i32
  }
  func.func @transform_8(%arg0: i32) -> (i32, i32) {
    %c0_i32 = arith.constant 0 : i32
    %c0_i32_0 = arith.constant 0 : i32
    return %arg0, %c0_i32 : i32, i32
  }
}

</mosaic_0001>

<llo_original>
// kernel: encoder_forward.1
$region0: #{encoder_forward.1}
  #allocation0 [shape = 'u32[]', space=smem, size = 0x4, offset = 0x4, fixed_abs, tag = 'smem constant byte address 0x4 - core index']
  #allocation1 [shape = 'u32[144,128]{1,0:T(1,128)}', space=vmem, size = 0x12000, scoped, tag = 'internal scratch']
  %s0 = inlined_call_operand.hbm [shape: f32[8,64], index: 0, kind: input, shape index: {}]
  %s1 = inlined_call_operand.hbm [shape: bf16[64,128], index: 1, kind: input, shape index: {}]
  %s2 = inlined_call_operand.vmem [shape: f32[1,128], index: 2, kind: input, shape index: {}]
  %s3 = inlined_call_operand.hbm [shape: bf16[128,128], index: 3, kind: input, shape index: {}]
  %s4 = inlined_call_operand.vmem [shape: f32[1,128], index: 4, kind: input, shape index: {}]
  %s5 = inlined_call_operand.hbm [shape: bf16[128,128], index: 5, kind: input, shape index: {}]
  %s6 = inlined_call_operand.vmem [shape: f32[1,128], index: 6, kind: input, shape index: {}]
  %s7 = inlined_call_operand.vmem [shape: f32[8,16], index: 7, kind: output, shape index: {0}]
  %s8 = inlined_call_operand.hbm [shape: f32[8,16], index: 8, kind: output, shape index: {1}]
  %9 = xla_tuple %s7, %s8
  %s10 = sld [smem:[#allocation0]]
  $region62: #{encoder_forward.1} parent=0
    _
  %s12 = ssub.s32 1, %s10
  %s13 = scalar_select 0, %s12, %s10
  $region1: #{encoder_forward.1} parent=0
    #allocation2 [shape = 'u8[4096]{0}', space=vmem, size = 0x1000, scoped, tag = 'input window, operand 0, single buffered']
    #allocation3 [shape = 's32[1]{0}', space=sflag, size = 0x4, scoped, tag = 'scoped memory for encoder_forward.1']
    #allocation4 [shape = 's32[1]{0}', space=sflag, size = 0x4, scoped, tag = 'scoped memory for encoder_forward.1']
    #allocation5 [shape = 'u8[16384]{0}', space=vmem, size = 0x4000, scoped, tag = 'input window, operand 1, single buffered']
    #allocation6 [shape = 's32[1]{0}', space=sflag, size = 0x4, scoped, tag = 'scoped memory for encoder_forward.1']
    #allocation7 [shape = 'u8[32768]{0}', space=vmem, size = 0x8000, scoped, tag = 'input window, operand 3, single buffered']
    #allocation8 [shape = 'u8[32768]{0}', space=vmem, size = 0x8000, scoped, tag = 'input window, operand 5, single buffered']
    #allocation9 [shape = 's32[1]{0}', space=sflag, size = 0x4, scoped, tag = 'scoped memory for encoder_forward.1']
    #allocation10 [shape = 'u8[4096]{0}', space=vmem, size = 0x1000, scoped, tag = 'output window, operand 1, single buffered']
    %14 = vsyncpa [#allocation3], 0
    %15 = vsyncpa [#allocation6], 0
    %16 = vsyncpa [#allocation9], 0
    %17 = vsyncpa [#allocation4], 0
    // Predicated region
    $region2: #{encoder_forward.1} parent=1 // pred_check
      _
    $region3: #{encoder_forward.1} parent=1 // pred_check_branch
      %19 = sbr.rel (0) target = $region5
    $region4: #{encoder_forward.1} parent=1 // pred_region
      %s21 = ssub.s32 128, 128
      %22 = vsyncadd [#allocation3], %s21
      %s24 = sshll.u32 [#allocation2], 4
      %s25 = int_to_ptr.vmem [resolvable:$true] %s24
      %27 = dma.hbm_to_vmem [thread:$0]  %s0, 128, %s25, [#allocation3]
    $region5: #{encoder_forward.1} parent=1 // pred_fallthru
      _
    // Predicated region
    $region6: #{encoder_forward.1} parent=1 // pred_check
      _
    $region7: #{encoder_forward.1} parent=1 // pred_check_branch
      %29 = sbr.rel (0) target = $region9
    $region8: #{encoder_forward.1} parent=1 // pred_region
      %s31 = ssub.s32 512, 512
      %32 = vsyncadd [#allocation6], %s31
      %s33 = sshll.u32 [#allocation5], 4
      %s34 = int_to_ptr.vmem [resolvable:$true] %s33
      %39 = dma.hbm_to_vmem [thread:$0]  %s1, 512, %s34, [#allocation6], 64, 64, 4
    $region9: #{encoder_forward.1} parent=1 // pred_fallthru
      _
    // Predicated region
    $region10: #{encoder_forward.1} parent=1 // pred_check
      _
    $region11: #{encoder_forward.1} parent=1 // pred_check_branch
      %41 = sbr.rel (0) target = $region13
    $region12: #{encoder_forward.1} parent=1 // pred_region
      _
    $region13: #{encoder_forward.1} parent=1 // pred_fallthru
      _
    // Predicated region
    $region14: #{encoder_forward.1} parent=1 // pred_check
      _
    $region15: #{encoder_forward.1} parent=1 // pred_check_branch
      %43 = sbr.rel (0) target = $region17
    $region16: #{encoder_forward.1} parent=1 // pred_region
      %s45 = ssub.s32 1024, 1024
      %46 = vsyncadd [#allocation6], %s45
      %s47 = sshll.u32 [#allocation7], 4
      %s48 = int_to_ptr.vmem [resolvable:$true] %s47
      %53 = dma.hbm_to_vmem [thread:$0]  %s3, 1024, %s48, [#allocation6], 64, 64, 4
    $region17: #{encoder_forward.1} parent=1 // pred_fallthru
      _
    // Predicated region
    $region18: #{encoder_forward.1} parent=1 // pred_check
      _
    $region19: #{encoder_forward.1} parent=1 // pred_check_branch
      %55 = sbr.rel (0) target = $region21
    $region20: #{encoder_forward.1} parent=1 // pred_region
      _
    $region21: #{encoder_forward.1} parent=1 // pred_fallthru
      _
    // Predicated region
    $region22: #{encoder_forward.1} parent=1 // pred_check
      _
    $region23: #{encoder_forward.1} parent=1 // pred_check_branch
      %57 = sbr.rel (0) target = $region25
    $region24: #{encoder_forward.1} parent=1 // pred_region
      %s59 = ssub.s32 1024, 1024
      %60 = vsyncadd [#allocation9], %s59
      %s61 = sshll.u32 [#allocation8], 4
      %s62 = int_to_ptr.vmem [resolvable:$true] %s61
      %67 = dma.hbm_to_vmem [thread:$0]  %s5, 1024, %s62, [#allocation9], 64, 64, 4
    $region25: #{encoder_forward.1} parent=1 // pred_fallthru
      _
    // Predicated region
    $region26: #{encoder_forward.1} parent=1 // pred_check
      _
    $region27: #{encoder_forward.1} parent=1 // pred_check_branch
      %69 = sbr.rel (0) target = $region29
    $region28: #{encoder_forward.1} parent=1 // pred_region
      _
    $region29: #{encoder_forward.1} parent=1 // pred_fallthru
      _
    // Predicated region
    $region30: #{encoder_forward.1} parent=1 // pred_check
      _
    $region31: #{encoder_forward.1} parent=1 // pred_check_branch
      %71 = sbr.rel (0) target = $region33
    $region32: #{encoder_forward.1} parent=1 // pred_region
      %72 = dma.done [#allocation3], 128
    $region33: #{encoder_forward.1} parent=1 // pred_fallthru
      _
    // Predicated region
    $region34: #{encoder_forward.1} parent=1 // pred_check
      _
    $region35: #{encoder_forward.1} parent=1 // pred_check_branch
      %74 = sbr.rel (0) target = $region37
    $region36: #{encoder_forward.1} parent=1 // pred_region
      %75 = dma.done [#allocation6], 512
    $region37: #{encoder_forward.1} parent=1 // pred_fallthru
      _
    // Predicated region
    $region38: #{encoder_forward.1} parent=1 // pred_check
      _
    $region39: #{encoder_forward.1} parent=1 // pred_check_branch
      %77 = sbr.rel (0) target = $region41
    $region40: #{encoder_forward.1} parent=1 // pred_region
      %78 = dma.done [#allocation6], 1024
    $region41: #{encoder_forward.1} parent=1 // pred_fallthru
      _
    // Predicated region
    $region42: #{encoder_forward.1} parent=1 // pred_check
      _
    $region43: #{encoder_forward.1} parent=1 // pred_check_branch
      %80 = sbr.rel (0) target = $region45
    $region44: #{encoder_forward.1} parent=1 // pred_region
      %81 = dma.done [#allocation9], 1024
    $region45: #{encoder_forward.1} parent=1 // pred_fallthru
      _
    %v83 = vld [vmem:[#allocation2] sm:$0xff]
    %v84 = vpack.c.bf16 %v83, %v83
    %v85 = vld [vmem:[#allocation5] sm:$0xf]
    %v86 = vld [vmem:[#allocation5 + $0x4] sm:$0xf]
    %v87 = vld [vmem:[#allocation5 + $0x8] sm:$0xf]
    %v88 = vld [vmem:[#allocation5 + $0xc] sm:$0xf]
    %v89 = vld [vmem:[#allocation5 + $0x10] sm:$0xf]
    %v90 = vld [vmem:[#allocation5 + $0x14] sm:$0xf]
    %v91 = vld [vmem:[#allocation5 + $0x18] sm:$0xf]
    %v92 = vld [vmem:[#allocation5 + $0x1c] sm:$0xf]
    %v93 = vld [vmem:[%s2] sm:$0x1]
    %v95 = vlaneseq
    %v96 = vshrl.u32 %v95, 7
    %v97 = vsub.s32 0, %v96
    %v98 = vrot.slane %v93, %v97
    %v108 = vunpack.c.l.b16 %v85
    %v109 = vunpack.c.l.b16 %v86
    %v110 = vunpack.c.l.b16 %v87
    %v111 = vunpack.c.l.b16 %v88
    %v112 = vunpack.c.l.b16 %v89
    %v113 = vunpack.c.l.b16 %v90
    %v114 = vunpack.c.l.b16 %v91
    %v115 = vunpack.c.l.b16 %v92
    %v116 = vpack.c.b16 %v109, %v108
    %v117 = vpack.c.b16 %v111, %v110
    %v118 = vpack.c.b16 %v113, %v112
    %v119 = vpack.c.b16 %v115, %v114
    %vm124 = vcmask 523264
    %v126 = vsel %vm124, %v84, 0
    %128 = vmatprep.subr.bf16.mxu0 0
    %129 = vmatpush1.bf16.msra.mxu0 %v116
    %130 = vmatprep.subr.bf16.mxu0 0
    %131 = vmatpush1.bf16.msra.mxu0 %v117
    %132 = vmatprep.subr.bf16.mxu0 0
    %133 = vmatpush1.bf16.msra.mxu0 %v118
    %134 = vmatprep.subr.bf16.mxu0 0
    %135 = vmatpush1.bf16.msra.mxu0 %v119
    %136 = vmatprep.subr.bf16.mxu0 0
    %137 = vmatpush1.bf16.msra.mxu0 0
    %138 = vmatprep.subr.bf16.mxu0 0
    %139 = vmatpush1.bf16.msra.mxu0 0
    %140 = vmatprep.subr.bf16.mxu0 0
    %141 = vmatpush1.bf16.msra.mxu0 0
    %142 = vmatprep.subr.bf16.mxu0 0
    %143 = vmatpush1.bf16.msra.mxu0 0
    %144 = vmatprep.subr.bf16.mxu0 0
    %145 = vmatpush1.bf16.msra.mxu0 0
    %146 = vmatprep.subr.bf16.mxu0 0
    %147 = vmatpush1.bf16.msra.mxu0 0
    %148 = vmatprep.subr.bf16.mxu0 0
    %149 = vmatpush1.bf16.msra.mxu0 0
    %150 = vmatprep.subr.bf16.mxu0 0
    %151 = vmatpush1.bf16.msra.mxu0 0
    %152 = vmatprep.subr.bf16.mxu0 0
    %153 = vmatpush1.bf16.msra.mxu0 0
    %154 = vmatprep.subr.bf16.mxu0 0
    %155 = vmatpush1.bf16.msra.mxu0 0
    %156 = vmatprep.subr.bf16.mxu0 0
    %157 = vmatpush1.bf16.msra.mxu0 0
    %158 = vmatprep.subr.bf16.mxu0 0
    %159 = vmatpush1.bf16.msra.mxu0 0
    %160 = vmatprep.mubr.bf16.mxu0 0
    %161 = vmatmul.mubr.bf16.gmra.mrb[0].mxu0 %v126
    %v162 = vpop.f32.mrb[0].mxu0
    %v163 = vadd.f32 %v98, %v162
    %v164 = vpop.f32.mrb[0].mxu0
    %v165 = vpop.f32.mrb[0].mxu0
    %v166 = vpop.f32.mrb[0].mxu0
    %167 = vdwg.mxu0
    %v168 = vmax.f32 %v163, 0.0
    %v169 = vpack.c.bf16 %v168, %v168
    %v170 = vld [vmem:[#allocation7] sm:$0xf]
    %v171 = vld [vmem:[#allocation7 + $0x4] sm:$0xf]
    %v172 = vld [vmem:[#allocation7 + $0x8] sm:$0xf]
    %v173 = vld [vmem:[#allocation7 + $0xc] sm:$0xf]
    %v174 = vld [vmem:[#allocation7 + $0x10] sm:$0xf]
    %v175 = vld [vmem:[#allocation7 + $0x14] sm:$0xf]
    %v176 = vld [vmem:[#allocation7 + $0x18] sm:$0xf]
    %v177 = vld [vmem:[#allocation7 + $0x1c] sm:$0xf]
    %v178 = vld [vmem:[#allocation7 + $0x20] sm:$0xf]
    %v179 = vld [vmem:[#allocation7 + $0x24] sm:$0xf]
    %v180 = vld [vmem:[#allocation7 + $0x28] sm:$0xf]
    %v181 = vld [vmem:[#allocation7 + $0x2c] sm:$0xf]
    %v182 = vld [vmem:[#allocation7 + $0x30] sm:$0xf]
    %v183 = vld [vmem:[#allocation7 + $0x34] sm:$0xf]
    %v184 = vld [vmem:[#allocation7 + $0x38] sm:$0xf]
    %v185 = vld [vmem:[#allocation7 + $0x3c] sm:$0xf]
    %v186 = vld [vmem:[%s4] sm:$0x1]
    %v188 = vlaneseq
    %v189 = vshrl.u32 %v188, 7
    %v190 = vsub.s32 0, %v189
    %v191 = vrot.slane %v186, %v190
    %v209 = vunpack.c.l.b16 %v170
    %v210 = vunpack.c.l.b16 %v171
    %v211 = vunpack.c.l.b16 %v172
    %v212 = vunpack.c.l.b16 %v173
    %v213 = vunpack.c.l.b16 %v174
    %v214 = vunpack.c.l.b16 %v175
    %v215 = vunpack.c.l.b16 %v176
    %v216 = vunpack.c.l.b16 %v177
    %v217 = vunpack.c.l.b16 %v178
    %v218 = vunpack.c.l.b16 %v179
    %v219 = vunpack.c.l.b16 %v180
    %v220 = vunpack.c.l.b16 %v181
    %v221 = vunpack.c.l.b16 %v182
    %v222 = vunpack.c.l.b16 %v183
    %v223 = vunpack.c.l.b16 %v184
    %v224 = vunpack.c.l.b16 %v185
    %v225 = vpack.c.b16 %v210, %v209
    %v226 = vpack.c.b16 %v212, %v211
    %v227 = vpack.c.b16 %v214, %v213
    %v228 = vpack.c.b16 %v216, %v215
    %v229 = vpack.c.b16 %v218, %v217
    %v230 = vpack.c.b16 %v220, %v219
    %v231 = vpack.c.b16 %v222, %v221
    %v232 = vpack.c.b16 %v224, %v223
    %241 = vmatprep.subr.bf16.mxu0 0
    %242 = vmatpush1.bf16.msra.mxu0 %v225
    %243 = vmatprep.subr.bf16.mxu0 0
    %244 = vmatpush1.bf16.msra.mxu0 %v226
    %245 = vmatprep.subr.bf16.mxu0 0
    %246 = vmatpush1.bf16.msra.mxu0 %v227
    %247 = vmatprep.subr.bf16.mxu0 0
    %248 = vmatpush1.bf16.msra.mxu0 %v228
    %249 = vmatprep.subr.bf16.mxu0 0
    %250 = vmatpush1.bf16.msra.mxu0 %v229
    %251 = vmatprep.subr.bf16.mxu0 0
    %252 = vmatpush1.bf16.msra.mxu0 %v230
    %253 = vmatprep.subr.bf16.mxu0 0
    %254 = vmatpush1.bf16.msra.mxu0 %v231
    %255 = vmatprep.subr.bf16.mxu0 0
    %256 = vmatpush1.bf16.msra.mxu0 %v232
    %257 = vmatprep.subr.bf16.mxu0 0
    %258 = vmatpush1.bf16.msra.mxu0 0
    %259 = vmatprep.subr.bf16.mxu0 0
    %260 = vmatpush1.bf16.msra.mxu0 0
    %261 = vmatprep.subr.bf16.mxu0 0
    %262 = vmatpush1.bf16.msra.mxu0 0
    %263 = vmatprep.subr.bf16.mxu0 0
    %264 = vmatpush1.bf16.msra.mxu0 0
    %265 = vmatprep.subr.bf16.mxu0 0
    %266 = vmatpush1.bf16.msra.mxu0 0
    %267 = vmatprep.subr.bf16.mxu0 0
    %268 = vmatpush1.bf16.msra.mxu0 0
    %269 = vmatprep.subr.bf16.mxu0 0
    %270 = vmatpush1.bf16.msra.mxu0 0
    %271 = vmatprep.subr.bf16.mxu0 0
    %272 = vmatpush1.bf16.msra.mxu0 0
    %273 = vmatprep.mubr.bf16.mxu0 0
    %274 = vmatmul.mubr.bf16.gmra.mrb[0].mxu0 %v169
    %v275 = vpop.f32.mrb[0].mxu0
    %v276 = vadd.f32 %v191, %v275
    %v277 = vpop.f32.mrb[0].mxu0
    %v278 = vpop.f32.mrb[0].mxu0
    %v279 = vpop.f32.mrb[0].mxu0
    %280 = vdwg.mxu0
    %v281 = vmax.f32 %v276, 0.0
    %v282 = vpack.c.bf16 %v281, %v281
    %v283 = vld [vmem:[#allocation8] sm:$0xf]
    %v284 = vld [vmem:[#allocation8 + $0x4] sm:$0xf]
    %v285 = vld [vmem:[#allocation8 + $0x8] sm:$0xf]
    %v286 = vld [vmem:[#allocation8 + $0xc] sm:$0xf]
    %v287 = vld [vmem:[#allocation8 + $0x10] sm:$0xf]
    %v288 = vld [vmem:[#allocation8 + $0x14] sm:$0xf]
    %v289 = vld [vmem:[#allocation8 + $0x18] sm:$0xf]
    %v290 = vld [vmem:[#allocation8 + $0x1c] sm:$0xf]
    %v291 = vld [vmem:[#allocation8 + $0x20] sm:$0xf]
    %v292 = vld [vmem:[#allocation8 + $0x24] sm:$0xf]
    %v293 = vld [vmem:[#allocation8 + $0x28] sm:$0xf]
    %v294 = vld [vmem:[#allocation8 + $0x2c] sm:$0xf]
    %v295 = vld [vmem:[#allocation8 + $0x30] sm:$0xf]
    %v296 = vld [vmem:[#allocation8 + $0x34] sm:$0xf]
    %v297 = vld [vmem:[#allocation8 + $0x38] sm:$0xf]
    %v298 = vld [vmem:[#allocation8 + $0x3c] sm:$0xf]
    %v299 = vld [vmem:[%s6] sm:$0x1]
    %v301 = vlaneseq
    %v302 = vshrl.u32 %v301, 7
    %v303 = vsub.s32 0, %v302
    %v304 = vrot.slane %v299, %v303
    %v322 = vunpack.c.l.b16 %v283
    %v323 = vunpack.c.l.b16 %v284
    %v324 = vunpack.c.l.b16 %v285
    %v325 = vunpack.c.l.b16 %v286
    %v326 = vunpack.c.l.b16 %v287
    %v327 = vunpack.c.l.b16 %v288
    %v328 = vunpack.c.l.b16 %v289
    %v329 = vunpack.c.l.b16 %v290
    %v330 = vunpack.c.l.b16 %v291
    %v331 = vunpack.c.l.b16 %v292
    %v332 = vunpack.c.l.b16 %v293
    %v333 = vunpack.c.l.b16 %v294
    %v334 = vunpack.c.l.b16 %v295
    %v335 = vunpack.c.l.b16 %v296
    %v336 = vunpack.c.l.b16 %v297
    %v337 = vunpack.c.l.b16 %v298
    %v338 = vpack.c.b16 %v323, %v322
    %v339 = vpack.c.b16 %v325, %v324
    %v340 = vpack.c.b16 %v327, %v326
    %v341 = vpack.c.b16 %v329, %v328
    %v342 = vpack.c.b16 %v331, %v330
    %v343 = vpack.c.b16 %v333, %v332
    %v344 = vpack.c.b16 %v335, %v334
    %v345 = vpack.c.b16 %v337, %v336
    %354 = vmatprep.subr.bf16.mxu0 0
    %355 = vmatpush1.bf16.msra.mxu0 %v338
    %356 = vmatprep.subr.bf16.mxu0 0
    %357 = vmatpush1.bf16.msra.mxu0 %v339
    %358 = vmatprep.subr.bf16.mxu0 0
    %359 = vmatpush1.bf16.msra.mxu0 %v340
    %360 = vmatprep.subr.bf16.mxu0 0
    %361 = vmatpush1.bf16.msra.mxu0 %v341
    %362 = vmatprep.subr.bf16.mxu0 0
    %363 = vmatpush1.bf16.msra.mxu0 %v342
    %364 = vmatprep.subr.bf16.mxu0 0
    %365 = vmatpush1.bf16.msra.mxu0 %v343
    %366 = vmatprep.subr.bf16.mxu0 0
    %367 = vmatpush1.bf16.msra.mxu0 %v344
    %368 = vmatprep.subr.bf16.mxu0 0
    %369 = vmatpush1.bf16.msra.mxu0 %v345
    %370 = vmatprep.subr.bf16.mxu0 0
    %371 = vmatpush1.bf16.msra.mxu0 0
    %372 = vmatprep.subr.bf16.mxu0 0
    %373 = vmatpush1.bf16.msra.mxu0 0
    %374 = vmatprep.subr.bf16.mxu0 0
    %375 = vmatpush1.bf16.msra.mxu0 0
    %376 = vmatprep.subr.bf16.mxu0 0
    %377 = vmatpush1.bf16.msra.mxu0 0
    %378 = vmatprep.subr.bf16.mxu0 0
    %379 = vmatpush1.bf16.msra.mxu0 0
    %380 = vmatprep.subr.bf16.mxu0 0
    %381 = vmatpush1.bf16.msra.mxu0 0
    %382 = vmatprep.subr.bf16.mxu0 0
    %383 = vmatpush1.bf16.msra.mxu0 0
    %384 = vmatprep.subr.bf16.mxu0 0
    %385 = vmatpush1.bf16.msra.mxu0 0
    %386 = vmatprep.mubr.bf16.mxu0 0
    %387 = vmatmul.mubr.bf16.gmra.mrb[0].mxu0 %v282
    %v388 = vpop.f32.mrb[0].mxu0
    %v389 = vadd.f32 %v304, %v388
    %v390 = vpop.f32.mrb[0].mxu0
    %v391 = vpop.f32.mrb[0].mxu0
    %v392 = vpop.f32.mrb[0].mxu0
    %393 = vdwg.mxu0
    %vm394 = vcmask 130048
    %395 = vst.msk [vmem:[%s7] sm:$0xff] %vm394, %v389
    %397 = vrot.lane.b32.xlu0 %v389, 112
    %v398 = vpop.permute.xlu0 %397
    %400 = vst.msk [vmem:[#allocation10] sm:$0xff] %vm394, %v398
    // Predicated region
    $region46: #{encoder_forward.1} parent=1 // pred_check
      _
    $region47: #{encoder_forward.1} parent=1 // pred_check_branch
      %402 = sbr.rel (0) target = $region49
    $region48: #{encoder_forward.1} parent=1 // pred_region
      _
    $region49: #{encoder_forward.1} parent=1 // pred_fallthru
      _
    // Predicated region
    $region50: #{encoder_forward.1} parent=1 // pred_check
      _
    $region51: #{encoder_forward.1} parent=1 // pred_check_branch
      %404 = sbr.rel (0) target = $region53
    $region52: #{encoder_forward.1} parent=1 // pred_region
      %s406 = ssub.s32 128, 128
      %407 = vsyncadd [#allocation4], %s406
      %s409 = sshll.u32 [#allocation10], 4
      %s410 = int_to_ptr.vmem [resolvable:$true] %s409
      %412 = dma.vmem_to_hbm [thread:$0]  %s410, 128, %s8, [#allocation4]
    $region53: #{encoder_forward.1} parent=1 // pred_fallthru
      _
    // Predicated region
    $region54: #{encoder_forward.1} parent=1 // pred_check
      _
    $region55: #{encoder_forward.1} parent=1 // pred_check_branch
      %414 = sbr.rel (0) target = $region57
    $region56: #{encoder_forward.1} parent=1 // pred_region
      _
    $region57: #{encoder_forward.1} parent=1 // pred_fallthru
      _
    // Predicated region
    $region58: #{encoder_forward.1} parent=1 // pred_check
      _
    $region59: #{encoder_forward.1} parent=1 // pred_check_branch
      %416 = sbr.rel (0) target = $region61
    $region60: #{encoder_forward.1} parent=1 // pred_region
      %417 = dma.done [#allocation4], 128
    $region61: #{encoder_forward.1} parent=1 // pred_fallthru
      _
    %418 = vsyncpa [#allocation3], 1
    %419 = vsyncpa [#allocation6], 1
    %420 = vsyncpa [#allocation9], 1
    %421 = vsyncpa [#allocation4], 1

</llo_original>
